<compile_context>
chip_gen: v7x
topology: tpu7x:2x2x1
jax: 0.10.0
libtpu: 0.0.40
codegen_flags: <defaults>
</compile_context>

<pallas_src>
import functools

import jax
import jax.numpy as jnp
from jax import lax
from jax.experimental import pallas as pl
from jax.experimental.pallas import tpu as pltpu

_NEG = -1e30                 # finite "minus infinity" (avoids inf-inf NaNs)
_TARGET_ELEMS = 256 * 1024   # ~1 MiB f32 block: ~85% of HBM roofline territory
_MAX_COL_TILE = 2048         # class-axis block cap (multiple of 128)


def _round_up(x, m):
    return ((x + m - 1) // m) * m


def _masked_ce_kernel(x_ref, t_ref, out_ref, m_acc, s_acc, p_acc, *,
                      num_classes, n_rows, n_cols, row_tile, col_tile):
    i = pl.program_id(0)          # row-tile index   ("parallel")
    j = pl.program_id(1)          # class-tile index ("arbitrary", reduction)
    n_cls_tiles = pl.num_programs(1)

    @pl.when(j == 0)
    def _():
        m_acc[...] = jnp.full_like(m_acc, _NEG)
        s_acc[...] = jnp.zeros_like(s_acc)
        p_acc[...] = jnp.zeros_like(p_acc)

    x = x_ref[...].astype(jnp.float32)            # (row_tile, col_tile)
    t = t_ref[...]                                # (row_tile, 1) int32

    # In-kernel masking of ragged row / class tiles (no HBM padding pass).
    row_ids = i * row_tile + lax.broadcasted_iota(jnp.int32, (row_tile, 1), 0)
    row_ok = row_ids < n_rows                                        # (rt, 1)
    col_ids = j * col_tile + lax.broadcasted_iota(jnp.int32, x.shape, 1)
    col_ok = col_ids < n_cols                                        # (rt, ct)
    x = jnp.where(row_ok & col_ok, x, _NEG)       # sanitize OOB reads

    # Online (running) log-sum-exp across class tiles.
    m_old = m_acc[...]
    m_new = jnp.maximum(m_old, jnp.max(x, axis=-1, keepdims=True))
    s_acc[...] = (s_acc[...] * jnp.exp(m_old - m_new)
                  + jnp.sum(jnp.exp(x - m_new), axis=-1, keepdims=True))
    m_acc[...] = m_new

    # Gather x[row, t] for the class tile that contains t (one-hot lane select).
    p_acc[...] += jnp.sum(jnp.where(col_ids == t, x, 0.0),
                          axis=-1, keepdims=True)

    @pl.when(j == n_cls_tiles - 1)
    def _():
        lse = m_acc[...] + jnp.log(s_acc[...])                       # (rt, 1)
        loss = lse - p_acc[...]                                      # (rt, 1)
        valid = row_ok & (t >= 0) & (t < num_classes)
        vmask = valid.astype(jnp.float32)
        part_sum = jnp.sum(loss * vmask)          # single reduce per row tile
        part_cnt = jnp.sum(vmask)
        # Lane-dense (8,128) output slab: [0,0]=partial sum, [0,1]=partial cnt.
        r = lax.broadcasted_iota(jnp.int32, (8, 128), 0)
        c = lax.broadcasted_iota(jnp.int32, (8, 128), 1)
        out_ref[...] = jnp.where((r == 0) & (c == 0), part_sum,
                                 jnp.where((r == 0) & (c == 1), part_cnt, 0.0))


def masked_cross_entropy_loss(inputs, targets, num_classes, *,
                              row_tile=None, col_tile=None):
    """inputs: (N, C) float32/bf16, targets: (N,) int -> scalar float32."""
    N, C = inputs.shape
    if N == 0:
        return jnp.zeros((), jnp.float32)

    # ---- class-axis tile (block large vocabularies, keep VMEM bounded) ----
    if col_tile is None:
        col_tile = C if C <= _MAX_COL_TILE else _MAX_COL_TILE
    assert col_tile == C or col_tile % 128 == 0, "col_tile must be C or k*128"
    n_col_tiles = pl.cdiv(C, col_tile)

    # ---- row tile: largest that keeps the block near the ~1 MiB sweet spot ----
    if row_tile is None:
        rt = max(16, min(1024, _TARGET_ELEMS // col_tile))
        rt = (rt // 16) * 16                      # bf16-friendly sublane count
        row_tile = min(rt, _round_up(N, 16))
    assert row_tile % 8 == 0
    n_row_tiles = pl.cdiv(N, row_tile)

    targets2d = targets.reshape(N, 1).astype(jnp.int32)

    kernel = functools.partial(
        _masked_ce_kernel, num_classes=num_classes, n_rows=N, n_cols=C,
        row_tile=row_tile, col_tile=col_tile)

    # Rough VMEM estimate: double-buffered input + f32 temporaries + scratch.
    est_vmem = (2 * row_tile * col_tile * inputs.dtype.itemsize
                + 6 * row_tile * col_tile * 4
                + 5 * row_tile * 128 * 4
                + 4 * 8 * 128 * 4)
    vmem_limit = int(min(48 * 2**20, max(32 * 2**20, est_vmem + (8 << 20))))

    out = pl.pallas_call(
        kernel,
        out_shape=jax.ShapeDtypeStruct((n_row_tiles, 8, 128), jnp.float32),
        grid_spec=pltpu.PrefetchScalarGridSpec(
            num_scalar_prefetch=0,
            grid=(n_row_tiles, n_col_tiles),
            in_specs=[
                pl.BlockSpec((row_tile, col_tile), lambda i, j: (i, j)),
                pl.BlockSpec((row_tile, 1), lambda i, j: (i, 0)),
            ],
            # One (8,128) partial-result slab per row tile; reduced in wrapper.
            out_specs=pl.BlockSpec((None, 8, 128), lambda i, j: (i, 0, 0)),
            scratch_shapes=[
                pltpu.VMEM((row_tile, 1), jnp.float32),   # running max
                pltpu.VMEM((row_tile, 1), jnp.float32),   # running exp-sum
                pltpu.VMEM((row_tile, 1), jnp.float32),   # picked logit x[t]
            ],
        ),
        compiler_params=pltpu.CompilerParams(
            dimension_semantics=("parallel", "arbitrary"),
            vmem_limit_bytes=vmem_limit,
        ),
    )(inputs, targets2d)

    part_sum = out[:, 0, 0]
    part_cnt = jnp.round(out[:, 0, 1]).astype(jnp.int32)   # exact int counts
    total_sum = part_sum.sum()
    total_cnt = part_cnt.sum()
    return jnp.where(total_cnt > 0,
                     total_sum / jnp.maximum(total_cnt, 1).astype(jnp.float32),
                     jnp.float32(0.0))


def _reference(inputs, targets, num_classes):
    valid = (targets >= 0) & (targets < num_classes)
    t_safe = jnp.where(valid, targets, 0)
    logp = jax.nn.log_softmax(inputs.astype(jnp.float32), axis=-1)
    per_row = -jnp.take_along_axis(logp, t_safe[:, None], axis=-1)[:, 0]
    vm = valid.astype(jnp.float32)
    cnt = vm.sum()
    return jnp.where(cnt > 0, (per_row * vm).sum() / jnp.maximum(cnt, 1.0), 0.0)


if __name__ == "__main__":
    key = jax.random.PRNGKey(0)
    k1, k2, k3, k4 = jax.random.split(key, 4)

    # Case 1: small shapes matching the module's typical use (f32, tiny C).
    num_classes = 10
    N = 16
    x = jax.random.normal(k1, (N, num_classes), dtype=jnp.float32)
    t = jax.random.randint(k2, (N,), minval=-2, maxval=num_classes + 2,
                           dtype=jnp.int32)
    loss = jax.block_until_ready(masked_cross_entropy_loss(x, t, num_classes))
    ref = _reference(x, t, num_classes)
    assert jnp.allclose(loss, ref, atol=1e-5, rtol=1e-5), (loss, ref)

    # Case 2: bf16 inputs + ragged row tiles + blocked class axis (online LSE).
    num_classes2 = 257
    N2 = 300
    x2 = jax.random.normal(k3, (N2, num_classes2),
                           dtype=jnp.float32).astype(jnp.bfloat16)
    t2 = jax.random.randint(k4, (N2,), minval=-3, maxval=num_classes2 + 3,
                            dtype=jnp.int32)
    loss2 = jax.block_until_ready(
        masked_cross_entropy_loss(x2, t2, num_classes2,
                                  row_tile=64, col_tile=128))
    ref2 = _reference(x2, t2, num_classes2)
    assert jnp.allclose(loss2, ref2, atol=1e-3, rtol=1e-3), (loss2, ref2)

    print("KERNEL_OK")
</pallas_src>

<mosaic_0001>
module attributes {stable_mosaic.version = 11 : i64} {
  func.func @_masked_ce_kernel(%arg0: i32, %arg1: i32, %arg2: memref<16x10xf32, #tpu.memory_space<vmem>>, %arg3: memref<16x1xi32, #tpu.memory_space<vmem>>, %arg4: memref<1x8x128xf32, #tpu.memory_space<vmem>>, %arg5: memref<16x1xf32, #tpu.memory_space<vmem>>, %arg6: memref<16x1xf32, #tpu.memory_space<vmem>>, %arg7: memref<16x1xf32, #tpu.memory_space<vmem>>) attributes {dimension_semantics = [#tpu.dimension_semantics<parallel>, #tpu.dimension_semantics<arbitrary>], iteration_bounds = array<i64: 1, 1>, scalar_prefetch = 0 : i64, scratch_operands = 3 : i64, tpu.core_type = #tpu.core_type<tc>, window_params = [{transform_indices = @transform_0, window_bounds = array<i64: 16, 10>}, {transform_indices = @transform_1, window_bounds = array<i64: 16, 1>}, {transform_indices = @transform_2, window_bounds = array<i64: 1, 8, 128>}]} {
    %c0_i32 = arith.constant 0 : i32
    %0 = arith.cmpi eq, %arg1, %c0_i32 : i32
    %1 = arith.extui %0 : i1 to i32
    %c0_i32_0 = arith.constant 0 : i32
    %2 = arith.cmpi ne, %1, %c0_i32_0 : i32
    scf.if %2 {
      %cst_24 = arith.constant -1.000000e+30 : f32
      %49 = vector.broadcast %cst_24 : f32 to vector<16x1xf32>
      %c0_25 = arith.constant 0 : index
      %c0_26 = arith.constant 0 : index
      %50 = vector.load %arg5[%c0_25, %c0_26] : memref<16x1xf32, #tpu.memory_space<vmem>>, vector<16x1xf32>
      tpu.vector_store %arg5[%c0_25, %c0_26], %49 {strides = array<i32>} : memref<16x1xf32, #tpu.memory_space<vmem>>, vector<16x1xf32>,
      %cst_27 = arith.constant 0.000000e+00 : f32
      %51 = vector.broadcast %cst_27 : f32 to vector<16x1xf32>
      %c0_28 = arith.constant 0 : index
      %c0_29 = arith.constant 0 : index
      %52 = vector.load %arg6[%c0_28, %c0_29] : memref<16x1xf32, #tpu.memory_space<vmem>>, vector<16x1xf32>
      tpu.vector_store %arg6[%c0_28, %c0_29], %51 {strides = array<i32>} : memref<16x1xf32, #tpu.memory_space<vmem>>, vector<16x1xf32>,
      %cst_30 = arith.constant 0.000000e+00 : f32
      %53 = vector.broadcast %cst_30 : f32 to vector<16x1xf32>
      %c0_31 = arith.constant 0 : index
      %c0_32 = arith.constant 0 : index
      %54 = vector.load %arg7[%c0_31, %c0_32] : memref<16x1xf32, #tpu.memory_space<vmem>>, vector<16x1xf32>
      tpu.vector_store %arg7[%c0_31, %c0_32], %53 {strides = array<i32>} : memref<16x1xf32, #tpu.memory_space<vmem>>, vector<16x1xf32>,
    } else {
    }
    %c0 = arith.constant 0 : index
    %c0_1 = arith.constant 0 : index
    %3 = vector.load %arg2[%c0, %c0_1] : memref<16x10xf32, #tpu.memory_space<vmem>>, vector<16x10xf32>
    %c0_2 = arith.constant 0 : index
    %c0_3 = arith.constant 0 : index
    %4 = vector.load %arg3[%c0_2, %c0_3] : memref<16x1xi32, #tpu.memory_space<vmem>>, vector<16x1xi32>
    %c16_i32 = arith.constant 16 : i32
    %5 = arith.muli %arg0, %c16_i32 : i32
    %6 = tpu.iota {dimensions = array<i32: 0>} : vector<16x1xi32>
    %7 = vector.broadcast %5 : i32 to vector<16x1xi32>
    %8 = arith.addi %7, %6 : vector<16x1xi32>
    %c16_i32_4 = arith.constant 16 : i32
    %9 = vector.broadcast %c16_i32_4 : i32 to vector<16x1xi32>
    %10 = arith.cmpi slt, %8, %9 : vector<16x1xi32>
    %c10_i32 = arith.constant 10 : i32
    %11 = arith.muli %arg1, %c10_i32 : i32
    %12 = tpu.iota {dimensions = array<i32: 1>} : vector<16x10xi32>
    %13 = vector.broadcast %11 : i32 to vector<16x10xi32>
    %14 = arith.addi %13, %12 : vector<16x10xi32>
    %c10_i32_5 = arith.constant 10 : i32
    %15 = vector.broadcast %c10_i32_5 : i32 to vector<16x10xi32>
    %16 = arith.cmpi slt, %14, %15 : vector<16x10xi32>
    %17 = vector.broadcast %10 : vector<16x1xi1> to vector<16x10xi1>
    %18 = arith.andi %17, %16 : vector<16x10xi1>
    %cst = arith.constant -1.000000e+30 : f32
    %19 = vector.broadcast %cst : f32 to vector<16x10xf32>
    %20 = arith.select %18, %3, %19 : vector<16x10xi1>, vector<16x10xf32>
    %c0_6 = arith.constant 0 : index
    %c0_7 = arith.constant 0 : index
    %21 = vector.load %arg5[%c0_6, %c0_7] : memref<16x1xf32, #tpu.memory_space<vmem>>, vector<16x1xf32>
    %cst_8 = arith.constant dense<0xFF800000> : vector<16xf32>
    %22 = vector.multi_reduction <maximumf>, %20, %cst_8 [1] : vector<16x10xf32> to vector<16xf32>
    %23 = vector.shape_cast %22 : vector<16xf32> to vector<16x1xf32>
    %24 = arith.maximumf %21, %23 : vector<16x1xf32>
    %c0_9 = arith.constant 0 : index
    %c0_10 = arith.constant 0 : index
    %25 = vector.load %arg6[%c0_9, %c0_10] : memref<16x1xf32, #tpu.memory_space<vmem>>, vector<16x1xf32>
    %26 = arith.subf %21, %24 : vector<16x1xf32>
    %27 = math.exp %26 : vector<16x1xf32>
    %28 = arith.mulf %25, %27 : vector<16x1xf32>
    %29 = vector.broadcast %24 : vector<16x1xf32> to vector<16x10xf32>
    %30 = arith.subf %20, %29 : vector<16x10xf32>
    %31 = math.exp %30 : vector<16x10xf32>
    %cst_11 = arith.constant dense<0.000000e+00> : vector<16xf32>
    %32 = vector.multi_reduction <add>, %31, %cst_11 [1] : vector<16x10xf32> to vector<16xf32>
    %33 = vector.shape_cast %32 : vector<16xf32> to vector<16x1xf32>
    %34 = arith.addf %28, %33 : vector<16x1xf32>
    %c0_12 = arith.constant 0 : index
    %c0_13 = arith.constant 0 : index
    %35 = vector.load %arg6[%c0_12, %c0_13] : memref<16x1xf32, #tpu.memory_space<vmem>>, vector<16x1xf32>
    tpu.vector_store %arg6[%c0_12, %c0_13], %34 {strides = array<i32>} : memref<16x1xf32, #tpu.memory_space<vmem>>, vector<16x1xf32>,
    %c0_14 = arith.constant 0 : index
    %c0_15 = arith.constant 0 : index
    %36 = vector.load %arg5[%c0_14, %c0_15] : memref<16x1xf32, #tpu.memory_space<vmem>>, vector<16x1xf32>
    tpu.vector_store %arg5[%c0_14, %c0_15], %24 {strides = array<i32>} : memref<16x1xf32, #tpu.memory_space<vmem>>, vector<16x1xf32>,
    %c0_16 = arith.constant 0 : index
    %c0_17 = arith.constant 0 : index
    %37 = vector.load %arg7[%c0_16, %c0_17] : memref<16x1xf32, #tpu.memory_space<vmem>>, vector<16x1xf32>
    %38 = vector.broadcast %4 : vector<16x1xi32> to vector<16x10xi32>
    %39 = arith.cmpi eq, %14, %38 : vector<16x10xi32>
    %cst_18 = arith.constant 0.000000e+00 : f32
    %40 = vector.broadcast %cst_18 : f32 to vector<16x10xf32>
    %41 = arith.select %39, %20, %40 : vector<16x10xi1>, vector<16x10xf32>
    %cst_19 = arith.constant dense<0.000000e+00> : vector<16xf32>
    %42 = vector.multi_reduction <add>, %41, %cst_19 [1] : vector<16x10xf32> to vector<16xf32>
    %43 = vector.shape_cast %42 : vector<16xf32> to vector<16x1xf32>
    %44 = arith.addf %37, %43 : vector<16x1xf32>
    %c0_20 = arith.constant 0 : index
    %c0_21 = arith.constant 0 : index
    %45 = vector.load %arg7[%c0_20, %c0_21] : memref<16x1xf32, #tpu.memory_space<vmem>>, vector<16x1xf32>
    tpu.vector_store %arg7[%c0_20, %c0_21], %44 {strides = array<i32>} : memref<16x1xf32, #tpu.memory_space<vmem>>, vector<16x1xf32>,
    %c0_i32_22 = arith.constant 0 : i32
    %46 = arith.cmpi eq, %arg1, %c0_i32_22 : i32
    %47 = arith.extui %46 : i1 to i32
    %c0_i32_23 = arith.constant 0 : i32
    %48 = arith.cmpi ne, %47, %c0_i32_23 : i32
    scf.if %48 {
      %c0_24 = arith.constant 0 : index
      %c0_25 = arith.constant 0 : index
      %49 = vector.load %arg5[%c0_24, %c0_25] : memref<16x1xf32, #tpu.memory_space<vmem>>, vector<16x1xf32>
      %c0_26 = arith.constant 0 : index
      %c0_27 = arith.constant 0 : index
      %50 = vector.load %arg6[%c0_26, %c0_27] : memref<16x1xf32, #tpu.memory_space<vmem>>, vector<16x1xf32>
      %51 = math.log %50 : vector<16x1xf32>
      %52 = arith.addf %49, %51 : vector<16x1xf32>
      %c0_28 = arith.constant 0 : index
      %c0_29 = arith.constant 0 : index
      %53 = vector.load %arg7[%c0_28, %c0_29] : memref<16x1xf32, #tpu.memory_space<vmem>>, vector<16x1xf32>
      %54 = arith.subf %52, %53 : vector<16x1xf32>
      %c0_i32_30 = arith.constant 0 : i32
      %55 = vector.broadcast %c0_i32_30 : i32 to vector<16x1xi32>
      %56 = arith.cmpi sge, %4, %55 : vector<16x1xi32>
      %57 = arith.andi %10, %56 : vector<16x1xi1>
      %c10_i32_31 = arith.constant 10 : i32
      %58 = vector.broadcast %c10_i32_31 : i32 to vector<16x1xi32>
      %59 = arith.cmpi slt, %4, %58 : vector<16x1xi32>
      %60 = arith.andi %57, %59 : vector<16x1xi1>
      %61 = arith.extui %60 : vector<16x1xi1> to vector<16x1xi32>
      %62 = arith.sitofp %61 : vector<16x1xi32> to vector<16x1xf32>
      %63 = arith.mulf %54, %62 : vector<16x1xf32>
      %64 = vector.shape_cast %63 : vector<16x1xf32> to vector<1x16x1xf32>
      %cst_32 = arith.constant dense<0.000000e+00> : vector<1xf32>
      %65 = vector.multi_reduction <add>, %64, %cst_32 [1, 2] : vector<1x16x1xf32> to vector<1xf32>
      %66 = vector.shape_cast %65 : vector<1xf32> to vector<1x1x1xf32>
      %67 = vector.extract %66[0, 0, 0] : f32 from vector<1x1x1xf32>
      %68 = vector.shape_cast %62 : vector<16x1xf32> to vector<1x16x1xf32>
      %cst_33 = arith.constant dense<0.000000e+00> : vector<1xf32>
      %69 = vector.multi_reduction <add>, %68, %cst_33 [1, 2] : vector<1x16x1xf32> to vector<1xf32>
      %70 = vector.shape_cast %69 : vector<1xf32> to vector<1x1x1xf32>
      %71 = vector.extract %70[0, 0, 0] : f32 from vector<1x1x1xf32>
      %72 = tpu.iota {dimensions = array<i32: 0>} : vector<8x128xi32>
      %73 = tpu.iota {dimensions = array<i32: 1>} : vector<8x128xi32>
      %c0_i32_34 = arith.constant 0 : i32
      %74 = vector.broadcast %c0_i32_34 : i32 to vector<8x128xi32>
      %75 = arith.cmpi eq, %72, %74 : vector<8x128xi32>
      %c0_i32_35 = arith.constant 0 : i32
      %76 = vector.broadcast %c0_i32_35 : i32 to vector<8x128xi32>
      %77 = arith.cmpi eq, %73, %76 : vector<8x128xi32>
      %78 = arith.andi %75, %77 : vector<8x128xi1>
      %c0_i32_36 = arith.constant 0 : i32
      %79 = vector.broadcast %c0_i32_36 : i32 to vector<8x128xi32>
      %80 = arith.cmpi eq, %72, %79 : vector<8x128xi32>
      %c1_i32 = arith.constant 1 : i32
      %81 = vector.broadcast %c1_i32 : i32 to vector<8x128xi32>
      %82 = arith.cmpi eq, %73, %81 : vector<8x128xi32>
      %83 = arith.andi %80, %82 : vector<8x128xi1>
      %cst_37 = arith.constant 0.000000e+00 : f32
      %84 = vector.broadcast %71 : f32 to vector<8x128xf32>
      %85 = vector.broadcast %cst_37 : f32 to vector<8x128xf32>
      %86 = arith.select %83, %84, %85 : vector<8x128xi1>, vector<8x128xf32>
      %87 = vector.broadcast %67 : f32 to vector<8x128xf32>
      %88 = arith.select %78, %87, %86 : vector<8x128xi1>, vector<8x128xf32>
      %c0_38 = arith.constant 0 : index
      %c0_39 = arith.constant 0 : index
      %c0_40 = arith.constant 0 : index
      %89 = vector.load %arg4[%c0_38, %c0_39, %c0_40] : memref<1x8x128xf32, #tpu.memory_space<vmem>>, vector<1x8x128xf32>
      %90 = vector.shape_cast %89 : vector<1x8x128xf32> to vector<8x128xf32>
      %91 = vector.shape_cast %88 : vector<8x128xf32> to vector<1x8x128xf32>
      tpu.vector_store %arg4[%c0_38, %c0_39, %c0_40], %91 {strides = array<i32>} : memref<1x8x128xf32, #tpu.memory_space<vmem>>, vector<1x8x128xf32>,
    } else {
    }
    return
  }
  func.func @transform_0(%arg0: i32, %arg1: i32) -> (i32, i32) {
    %c0_i32 = arith.constant 0 : i32
    return %arg0, %arg1 : i32, i32
  }
  func.func @transform_1(%arg0: i32, %arg1: i32) -> (i32, i32) {
    %c0_i32 = arith.constant 0 : i32
    %c0_i32_0 = arith.constant 0 : i32
    return %arg0, %c0_i32 : i32, i32
  }
  func.func @transform_2(%arg0: i32, %arg1: i32) -> (i32, i32, i32) {
    %c0_i32 = arith.constant 0 : i32
    %c0_i32_0 = arith.constant 0 : i32
    %c0_i32_1 = arith.constant 0 : i32
    return %arg0, %c0_i32, %c0_i32_0 : i32, i32, i32
  }
}

</mosaic_0001>

<llo_original>
// kernel: tpu_custom_call.1
$region0: #{tpu_custom_call.1}
  #allocation0 [shape = 'u32[]', space=smem, size = 0x4, offset = 0x4, fixed_abs, tag = 'smem constant byte address 0x4 - core index']
  #allocation1 [shape = 'u32[144,128]{1,0:T(1,128)}', space=vmem, size = 0x12000, scoped, tag = 'internal scratch']
  #allocation2 [shape = 'f32[16,1]{1,0:T(8,128)}', space=vmem, size = 0x2000, scoped, tag = 'scratch operand']
  #allocation3 [shape = 'f32[16,1]{1,0:T(8,128)}', space=vmem, size = 0x2000, scoped, tag = 'scratch operand']
  #allocation4 [shape = 'f32[16,1]{1,0:T(8,128)}', space=vmem, size = 0x2000, scoped, tag = 'scratch operand']
  %s0 = inlined_call_operand.vmem [shape: f32[16,10], index: 0, kind: input, shape index: {}]
  %s1 = inlined_call_operand.vmem [shape: s32[16,1], index: 1, kind: input, shape index: {}]
  %s2 = inlined_call_operand.hbm [shape: f32[1,8,128], index: 2, kind: output, shape index: {}]
  %s3 = sld [smem:[#allocation0]]
  $region26: #{tpu_custom_call.1} parent=0
    _
  %s5 = ssub.s32 1, %s3
  %s6 = scalar_select 0, %s5, %s3
  $region1: #{tpu_custom_call.1} parent=0
    #allocation5 [shape = 'u8[4096]{0}', space=vmem, size = 0x1000, scoped, tag = 'output window, operand 0, single buffered']
    #allocation6 [shape = 's32[1]{0}', space=sflag, size = 0x4, scoped, tag = 'scoped memory for tpu_custom_call.1']
    %7 = vsyncpa [#allocation6], 0
    // Predicated region
    $region2: #{tpu_custom_call.1} parent=1 // pred_check
      _
    $region3: #{tpu_custom_call.1} parent=1 // pred_check_branch
      %9 = sbr.rel (0) target = $region5
    $region4: #{tpu_custom_call.1} parent=1 // pred_region
      _
    $region5: #{tpu_custom_call.1} parent=1 // pred_fallthru
      _
    // Predicated region
    $region6: #{tpu_custom_call.1} parent=1 // pred_check
      _
    $region7: #{tpu_custom_call.1} parent=1 // pred_check_branch
      %11 = sbr.rel (0) target = $region9
    $region8: #{tpu_custom_call.1} parent=1 // pred_region
      _
    $region9: #{tpu_custom_call.1} parent=1 // pred_fallthru
      _
    %p12 = scmp.eq.s32.totalorder 0, 0
    // Predicated region
    $region10: #{tpu_custom_call.1} parent=1 // pred_check
      %p13 = pneg %p12
    $region11: #{tpu_custom_call.1} parent=1 // pred_check_branch
      %15 = sbr.rel (%p13) target = $region13
    $region12: #{tpu_custom_call.1} parent=1 // pred_region
      %vm16 = vcmask 7168
      %17 = vst.msk [vmem:[#allocation2] sm:$0xff] %vm16, -1e+30
      %18 = vst.msk [vmem:[#allocation2 + $0x8] sm:$0xff] %vm16, -1e+30
      %19 = vst.msk [vmem:[#allocation3] sm:$0xff] %vm16, 0.0
      %20 = vst.msk [vmem:[#allocation3 + $0x8] sm:$0xff] %vm16, 0.0
      %21 = vst.msk [vmem:[#allocation4] sm:$0xff] %vm16, 0.0
      %22 = vst.msk [vmem:[#allocation4 + $0x8] sm:$0xff] %vm16, 0.0
    $region13: #{tpu_custom_call.1} parent=1 // pred_fallthru
      _
    %v23 = vld [vmem:[%s0] sm:$0xff]
    %v24 = vld [vmem:[%s0 + $0x8] sm:$0xff]
    %v25 = vld [vmem:[%s1] sm:$0xff]
    %v26 = vld [vmem:[%s1 + $0x8] sm:$0xff]
    %s27 = smul.u32 0, 16
    %v28 = vlaneseq
    %v29 = vshrl.u32 %v28, 7
    %v30 = vadd.s32 %v29, 8
    %v31 = vstv %s27
    %v32 = vadd.s32 %v31, %v29
    %v33 = vadd.s32 %v31, %v30
    %vm34 = vcmp.lt.s32.totalorder %v32, 16
    %vm35 = vcmp.lt.s32.totalorder %v33, 16
    %s36 = smul.u32 0, 10
    %v37 = vlaneseq
    %v38 = vand.u32 %v37, 127
    %v39 = vstv %s36
    %v40 = vadd.s32 %v39, %v38
    %vm41 = vcmp.lt.s32.totalorder %v40, 10
    %v42 = vsel %vm34, 1, 0
    %v43 = vsel %vm35, 1, 0
    %vm44 = vcmp.eq.s32.totalorder %v42, 1
    %vm45 = vcmp.eq.s32.totalorder %v43, 1
    %vm46 = vmand %vm44, %vm41
    %vm47 = vmand %vm45, %vm41
    %v48 = vsel %vm46, %v23, -1e+30
    %v49 = vsel %vm47, %v24, -1e+30
    %v50 = vld [vmem:[#allocation2] sm:$0xff]
    %v51 = vld [vmem:[#allocation2 + $0x8] sm:$0xff]
    %vm52 = vcmask 80896
    %v53 = vsel %vm52, %v48, -inf
    %54 = vmax.xlane.f32.xlu0 %v53
    %v55 = vpop.xlane.xlu0 %54
    %v56 = vsel %vm52, %v49, -inf
    %57 = vmax.xlane.f32.xlu0 %v56
    %v58 = vpop.xlane.xlu0 %57
    %v59 = vmax.f32 %v50, %v55
    %v60 = vmax.f32 %v51, %v58
    %v61 = vld [vmem:[#allocation3] sm:$0xff]
    %v62 = vld [vmem:[#allocation3 + $0x8] sm:$0xff]
    %v63 = vsub.f32 %v50, %v59
    %v64 = vsub.f32 %v51, %v60
    %v65 = vmul.f32 %v63, 1.442695
    %v66 = vpow.pop %v65
    %v67 = vmul.f32 %v64, 1.442695
    %v68 = vpow.pop %v67
    %v69 = vmul.f32 %v61, %v66
    %v70 = vmul.f32 %v62, %v68
    %72 = vset.pattern.permute.xlu0 0
    %73 = vperm.xlu0 %72, %v59
    %v74 = vpop.permute.xlu0 %73
    %77 = vset.pattern.permute.xlu0 0
    %78 = vperm.xlu0 %77, %v60
    %v79 = vpop.permute.xlu0 %78
    %v81 = vsub.f32 %v48, %v74
    %v82 = vsub.f32 %v49, %v79
    %v83 = vmul.f32 %v81, 1.442695
    %v84 = vpow.pop %v83
    %v85 = vmul.f32 %v82, 1.442695
    %v86 = vpow.pop %v85
    %v87 = vsel %vm52, %v84, 0.0
    %88 = vadd.xlane.f32.xlu0 %v87
    %v89 = vpop.xlane.xlu0 %88
    %v90 = vsel %vm52, %v86, 0.0
    %91 = vadd.xlane.f32.xlu0 %v90
    %v92 = vpop.xlane.xlu0 %91
    %v93 = vadd.f32 %v69, %v89
    %v94 = vadd.f32 %v70, %v92
    %vm95 = vcmask 7168
    %96 = vst.msk [vmem:[#allocation3] sm:$0xff] %vm95, %v93
    %97 = vst.msk [vmem:[#allocation3 + $0x8] sm:$0xff] %vm95, %v94
    %98 = vst.msk [vmem:[#allocation2] sm:$0xff] %vm95, %v59
    %99 = vst.msk [vmem:[#allocation2 + $0x8] sm:$0xff] %vm95, %v60
    %v100 = vld [vmem:[#allocation4] sm:$0xff]
    %v101 = vld [vmem:[#allocation4 + $0x8] sm:$0xff]
    %102 = vset.pattern.permute.xlu0 0
    %103 = vperm.xlu0 %102, %v25
    %v104 = vpop.permute.xlu0 %103
    %105 = vset.pattern.permute.xlu0 0
    %106 = vperm.xlu0 %105, %v26
    %v107 = vpop.permute.xlu0 %106
    %vm108 = vcmp.eq.s32.totalorder %v40, %v104
    %vm109 = vcmp.eq.s32.totalorder %v40, %v107
    %v110 = vsel %vm108, %v48, 0.0
    %v111 = vsel %vm109, %v49, 0.0
    %v112 = vsel %vm52, %v110, 0.0
    %113 = vadd.xlane.f32.xlu0 %v112
    %v114 = vpop.xlane.xlu0 %113
    %v115 = vsel %vm52, %v111, 0.0
    %116 = vadd.xlane.f32.xlu0 %v115
    %v117 = vpop.xlane.xlu0 %116
    %v118 = vadd.f32 %v100, %v114
    %v119 = vadd.f32 %v101, %v117
    %120 = vst.msk [vmem:[#allocation4] sm:$0xff] %vm95, %v118
    %121 = vst.msk [vmem:[#allocation4 + $0x8] sm:$0xff] %vm95, %v119
    // Predicated region
    $region14: #{tpu_custom_call.1} parent=1 // pred_check
      %p122 = pneg %p12
    $region15: #{tpu_custom_call.1} parent=1 // pred_check_branch
      %124 = sbr.rel (%p122) target = $region17
    $region16: #{tpu_custom_call.1} parent=1 // pred_region
      %v125 = vld [vmem:[#allocation2] sm:$0xff]
      %v126 = vld [vmem:[#allocation2 + $0x8] sm:$0xff]
      %v127 = vld [vmem:[#allocation3] sm:$0xff]
      %v128 = vld [vmem:[#allocation3 + $0x8] sm:$0xff]
      %v129 = vlog2.pop %v127
      %v130 = vmul.f32 %v129, 0.6931472
      %v131 = vlog2.pop %v128
      %v132 = vmul.f32 %v131, 0.6931472
      %v133 = vadd.f32 %v125, %v130
      %v134 = vadd.f32 %v126, %v132
      %v135 = vld [vmem:[#allocation4] sm:$0xff]
      %v136 = vld [vmem:[#allocation4 + $0x8] sm:$0xff]
      %v137 = vsub.f32 %v133, %v135
      %v138 = vsub.f32 %v134, %v136
      %vm139 = vcmp.ge.s32.totalorder %v25, 0
      %vm140 = vcmp.ge.s32.totalorder %v26, 0
      %vm141 = vmand %vm34, %vm139
      %vm142 = vmand %vm35, %vm140
      %vm143 = vcmp.lt.s32.totalorder %v25, 10
      %vm144 = vcmp.lt.s32.totalorder %v26, 10
      %vm145 = vmand %vm141, %vm143
      %vm146 = vmand %vm142, %vm144
      %v147 = vsel %vm145, 1, 0
      %v148 = vsel %vm146, 1, 0
      %v149 = vcvt.s32.f32 %v147
      %v150 = vcvt.s32.f32 %v148
      %v151 = vmul.f32 %v137, %v149
      %v152 = vmul.f32 %v138, %v150
      %v153 = vsel %vm95, %v151, 0.0
      %v154 = vsel %vm95, %v152, 0.0
      %v155 = vadd.f32 %v153, %v154
      %156 = vadd.xlane.f32.xlu0 %v155
      %v157 = vpop.xlane.xlu0 %156
      %v158 = vrot.slane %v157, 4
      %v159 = vadd.f32 %v157, %v158
      %v160 = vrot.slane %v159, 2
      %v161 = vadd.f32 %v159, %v160
      %v162 = vrot.slane %v161, 1
      %v163 = vadd.f32 %v161, %v162
      %s164 = vtos %v163
      %v165 = vsel %vm95, %v149, 0.0
      %v166 = vsel %vm95, %v150, 0.0
      %v167 = vadd.f32 %v165, %v166
      %168 = vadd.xlane.f32.xlu0 %v167
      %v169 = vpop.xlane.xlu0 %168
      %v170 = vrot.slane %v169, 4
      %v171 = vadd.f32 %v169, %v170
      %v172 = vrot.slane %v171, 2
      %v173 = vadd.f32 %v171, %v172
      %v174 = vrot.slane %v173, 1
      %v175 = vadd.f32 %v173, %v174
      %s176 = vtos %v175
      %vm177 = vcmp.eq.s32.totalorder %v29, 0
      %vm178 = vcmp.eq.s32.totalorder %v38, 0
      %vm179 = vmand %vm177, %vm178
      %vm180 = vcmp.eq.s32.totalorder %v38, 1
      %vm181 = vmand %vm177, %vm180
      %v182 = vstv %s176
      %v183 = vsel %vm181, %v182, 0.0
      %v184 = vstv %s164
      %v185 = vsel %vm179, %v184, %v183
      %186 = vst [vmem:[#allocation5] sm:$0xff] %v185
    $region17: #{tpu_custom_call.1} parent=1 // pred_fallthru
      _
    // Predicated region
    $region18: #{tpu_custom_call.1} parent=1 // pred_check
      _
    $region19: #{tpu_custom_call.1} parent=1 // pred_check_branch
      %188 = sbr.rel (0) target = $region21
    $region20: #{tpu_custom_call.1} parent=1 // pred_region
      %s190 = ssub.s32 128, 128
      %191 = vsyncadd [#allocation6], %s190
      %s193 = sshll.u32 [#allocation5], 4
      %s194 = int_to_ptr.vmem [resolvable:$true] %s193
      %196 = dma.vmem_to_hbm [thread:$0]  %s194, 128, %s2, [#allocation6]
    $region21: #{tpu_custom_call.1} parent=1 // pred_fallthru
      _
    // Predicated region
    $region22: #{tpu_custom_call.1} parent=1 // pred_check
      _
    $region23: #{tpu_custom_call.1} parent=1 // pred_check_branch
      %198 = sbr.rel (0) target = $region25
    $region24: #{tpu_custom_call.1} parent=1 // pred_region
      %199 = dma.done [#allocation6], 128
    $region25: #{tpu_custom_call.1} parent=1 // pred_fallthru
      _
    %200 = vsyncpa [#allocation6], 1

</llo_original>
